<compile_context>
chip_gen: v7x
topology: tpu7x:2x2x1
jax: 0.10.0
libtpu: 0.0.40
codegen_flags: <defaults>
</compile_context>

<pallas_src>
from functools import partial

import numpy as np
import jax
import jax.numpy as jnp
from jax.experimental import pallas as pl
from jax.experimental.pallas import tpu as pltpu


# ---------------------------------------------------------------------------
# Interpolation matrices (exact PyTorch AdaptiveAvgPool2d / bilinear
# align_corners=True semantics), built host-side with numpy.
# ---------------------------------------------------------------------------
def _adaptive_pool_matrix(in_size, out_size):
    P = np.zeros((out_size, in_size), np.float32)
    for i in range(out_size):
        start = (i * in_size) // out_size
        end = -((-(i + 1) * in_size) // out_size)       # ceil((i+1)*in/out)
        P[i, start:end] = 1.0 / (end - start)
    return jnp.asarray(P)


def _upsample_matrix(out_size, in_size):
    A = np.zeros((out_size, in_size), np.float32)
    if in_size == 1:
        A[:, 0] = 1.0
    else:
        for i in range(out_size):
            src = i * (in_size - 1) / (out_size - 1) if out_size > 1 else 0.0
            lo = int(np.floor(src))
            hi = min(lo + 1, in_size - 1)
            frac = src - lo
            A[i, lo] += 1.0 - frac
            A[i, hi] += frac
    return jnp.asarray(A)


def _pick_band_height(H, preferred=(8, 16, 12, 10, 6, 5, 4, 3, 2, 1)):
    """Pick a row-band height TH that divides H (prefer multiples of 8)."""
    for th in preferred:
        if th <= H and H % th == 0:
            return th
    return H


# ---------------------------------------------------------------------------
# Pallas kernel 1: all four stage 1x1 convolutions (bias + ReLU) in ONE launch.
# Inputs are stacked over a 'stage' grid axis; bf16 operands, f32 accumulate.
# ---------------------------------------------------------------------------
def _stage_conv1x1_kernel(x_ref, w_ref, b_ref, o_ref):
    y = jnp.dot(x_ref[0], w_ref[0], preferred_element_type=jnp.float32)
    y = y + b_ref[0]
    o_ref[0] = jnp.maximum(y, 0.0).astype(o_ref.dtype)


def stage_conv1x1_relu(x_all, w_all, b_all):
    S, M, C = x_all.shape
    return pl.pallas_call(
        _stage_conv1x1_kernel,
        out_shape=jax.ShapeDtypeStruct((S, M, C), jnp.float32),
        grid_spec=pltpu.PrefetchScalarGridSpec(
            num_scalar_prefetch=0,
            grid=(S,),
            in_specs=[
                pl.BlockSpec((1, M, C), lambda s: (s, 0, 0)),
                pl.BlockSpec((1, C, C), lambda s: (s, 0, 0)),
                pl.BlockSpec((1, 1, C), lambda s: (s, 0, 0)),
            ],
            out_specs=pl.BlockSpec((1, M, C), lambda s: (s, 0, 0)),
        ),
        compiler_params=pltpu.CompilerParams(dimension_semantics=("parallel",)),
    )(x_all, w_all, b_all)


# ---------------------------------------------------------------------------
# Pallas kernel 2: fused bottleneck
#   upsample(H) + concat + zero-pad + 3x3 conv + bias + ReLU
# grid = (batch, row_band, channel_group); channel_group accumulates.
# ---------------------------------------------------------------------------
def _fused_bottleneck_kernel(ah_ref, b_ref, w_ref, bias_ref, x_hbm,
                             o_ref, acc_ref, xband_ref, sem,
                             *, TH, W, C, Cout, s_pad, n_groups):
    n = pl.program_id(0)          # batch
    i = pl.program_id(1)          # row band
    k = pl.program_id(2)          # channel group (0..n_groups-2 priors, last = identity)
    last = n_groups - 1
    r0 = pl.multiple_of(i * TH, TH)          # first padded row of this band's halo window

    def x_band_copy():
        # identity-branch rows [r0, r0 + TH + 2) of the pre-padded bf16 feature map
        return pltpu.make_async_copy(x_hbm.at[n, pl.ds(r0, TH + 2)], xband_ref, sem)

    @pl.when(k == 0)
    def _init():
        # fresh accumulator for this (batch, band); bias folded in once
        acc_ref[...] = jnp.zeros((TH * W, Cout), jnp.float32) + bias_ref[...]
        # start streaming the identity band now, consume it at k == last (overlap)
        x_band_copy().start()

    def accumulate(band):
        # band: (TH+2, W+2, C) bf16 with the conv zero padding already built in.
        acc = acc_ref[...]
        for dy in range(3):
            for dx in range(3):
                tap = band[dy:dy + TH, dx:dx + W, :].reshape(TH * W, C)
                acc = acc + jnp.dot(tap, w_ref[0, 3 * dy + dx],
                                    preferred_element_type=jnp.float32)
        acc_ref[...] = acc

    @pl.when(k < last)
    def _pyramid_group():
        # Build this prior's (TH+2, W+2, C) band in VMEM: the W-axis upsample
        # (and zero edge columns) are already folded into b_ref by the wrapper;
        # the H-axis upsample is s_pad cheap broadcast-MACs with the per-band
        # slice of the (zero-edge-padded) Ah interpolation matrix.
        ah = ah_ref[0, 0]                                   # (TH+2, s_pad)   f32
        bmat = b_ref[0]                                     # (s_pad, W+2, C) bf16
        band = jnp.zeros((TH + 2, W + 2, C), jnp.float32)
        for p in range(s_pad):
            band = band + ah[:, p:p + 1][:, :, None] * bmat[p].astype(jnp.float32)
        accumulate(band.astype(jnp.bfloat16))

    @pl.when(k == last)
    def _identity_group_and_finalize():
        x_band_copy().wait()
        accumulate(xband_ref[...])
        o_ref[0] = (jnp.maximum(acc_ref[...], 0.0)
                    .reshape(TH, W, Cout).astype(o_ref.dtype))


def fused_bottleneck(ah_bands, b_flat, w_groups, bias, x_pad, *,
                     N, H, W, C, Cout, TH, s_pad, n_groups):
    n_bands = H // TH
    n_stages = n_groups - 1
    kernel = partial(_fused_bottleneck_kernel, TH=TH, W=W, C=C, Cout=Cout,
                     s_pad=s_pad, n_groups=n_groups)
    # NOTE: the Cin grid tile is one channel group (= C features).  For very
    # large feature counts C could be split further into sub-K tiles.
    return pl.pallas_call(
        kernel,
        out_shape=jax.ShapeDtypeStruct((N, H, W, Cout), jnp.float32),
        grid_spec=pltpu.PrefetchScalarGridSpec(
            num_scalar_prefetch=0,
            grid=(N, n_bands, n_groups),
            in_specs=[
                # per-band slice of the zero-edge-padded H interpolation matrix
                pl.BlockSpec((1, 1, TH + 2, s_pad),
                             lambda n, i, k: (jnp.minimum(k, n_stages - 1), i, 0, 0)),
                # W-upsampled, column-padded pooled priors (tiny, per batch & stage)
                pl.BlockSpec((1, s_pad, W + 2, C),
                             lambda n, i, k: (n * n_stages + jnp.minimum(k, n_stages - 1),
                                              0, 0, 0)),
                # 3x3 weight slice for this channel group (Cin-tiled over the grid)
                pl.BlockSpec((1, 9, C, Cout), lambda n, i, k: (k, 0, 0, 0)),
                pl.BlockSpec((1, Cout), lambda n, i, k: (0, 0)),
                # identity branch stays in HBM; the kernel streams row bands via DMA
                pl.BlockSpec(memory_space=pl.ANY),
            ],
            out_specs=pl.BlockSpec((1, TH, W, Cout), lambda n, i, k: (n, i, 0, 0)),
            scratch_shapes=[
                pltpu.VMEM((TH * W, Cout), jnp.float32),        # f32 accumulator
                pltpu.VMEM((TH + 2, W + 2, C), jnp.bfloat16),   # identity row band
                pltpu.SemaphoreType.DMA(()),
            ]),
        compiler_params=pltpu.CompilerParams(
            dimension_semantics=("parallel", "parallel", "arbitrary"),
            vmem_limit_bytes=48 * 1024 * 1024),
    )(ah_bands, b_flat, w_groups, bias, x_pad)


# ---------------------------------------------------------------------------
# Full PSPModule forward
# ---------------------------------------------------------------------------
def psp_module_forward(x_nchw, params, sizes=(1, 2, 3, 6)):
    N, C, H, W = x_nchw.shape
    n_stages = len(sizes)
    n_groups = n_stages + 1
    s_pad = max(sizes)
    Cout = params['bottleneck_w'].shape[-1]
    TH = _pick_band_height(H)
    n_bands = H // TH

    x = jnp.transpose(x_nchw, (0, 2, 3, 1)).astype(jnp.float32)      # NHWC

    # adaptive average pooling (tiny) + ONE fused launch for the 1x1 stage convs
    Mmax = N * s_pad * s_pad
    pooled = []
    for s in sizes:
        Ph = _adaptive_pool_matrix(H, s)
        Pw = _adaptive_pool_matrix(W, s)
        p_ = jnp.einsum('ph,nhwc->npwc', Ph, x)
        p_ = jnp.einsum('qw,npwc->npqc', Pw, p_).reshape(N * s * s, C)
        pooled.append(jnp.pad(p_, ((0, Mmax - N * s * s), (0, 0))))
    pooled_all = jnp.stack(pooled, 0).astype(jnp.bfloat16)           # (S, Mmax, C)
    w_all = jnp.stack(params['stage_w'], 0).astype(jnp.bfloat16)     # (S, C, C)
    b_all = jnp.stack(params['stage_b'], 0).reshape(n_stages, 1, C).astype(jnp.float32)
    y_all = stage_conv1x1_relu(pooled_all, w_all, b_all)             # (S, Mmax, C) f32

    # fold the W-axis upsample (+ the conv's zero edge columns) into compact
    # per-stage tensors; the H-axis upsample happens inside the bottleneck
    # kernel, so the (N,H,W,5C) concat never touches HBM.
    b_list, ah_list = [], []
    for kst, s in enumerate(sizes):
        y_k = y_all[kst, :N * s * s].reshape(N, s, s, C)
        Aw_pad = jnp.pad(_upsample_matrix(W, s), ((1, 1), (0, 0)))   # (W+2, s)
        b_k = jnp.einsum('wq,npqc->npwc', Aw_pad, y_k)               # (N, s, W+2, C)
        b_list.append(jnp.pad(b_k, ((0, 0), (0, s_pad - s), (0, 0), (0, 0))))
        Ah_pad = jnp.pad(_upsample_matrix(H, s), ((1, 1), (0, s_pad - s)))   # (H+2, s_pad)
        ah_list.append(jnp.stack([Ah_pad[i * TH:i * TH + TH + 2]
                                  for i in range(n_bands)], 0))      # (n_bands, TH+2, s_pad)
    b_flat = (jnp.stack(b_list, 1)
              .reshape(N * n_stages, s_pad, W + 2, C).astype(jnp.bfloat16))
    ah_bands = jnp.stack(ah_list, 0).astype(jnp.float32)             # (S, n_bands, TH+2, s_pad)

    # identity branch: a single pre-padded bf16 copy, streamed band-by-band in-kernel
    x_pad = jnp.pad(x, ((0, 0), (1, 1), (1, 1), (0, 0))).astype(jnp.bfloat16)

    # 3x3 bottleneck weight regrouped per concat channel group, bf16
    w_groups = (params['bottleneck_w'].reshape(3, 3, n_groups, C, Cout)
                .transpose(2, 0, 1, 3, 4).reshape(n_groups, 9, C, Cout)
                .astype(jnp.bfloat16))
    bias = params['bottleneck_b'].reshape(1, Cout).astype(jnp.float32)

    out = fused_bottleneck(ah_bands, b_flat, w_groups, bias, x_pad,
                           N=N, H=H, W=W, C=C, Cout=Cout, TH=TH,
                           s_pad=s_pad, n_groups=n_groups)
    return jnp.transpose(out, (0, 3, 1, 2))                          # back to NCHW


# Pure-jnp f32 reference (identical math, no Pallas) used only for verification.
def _ref_forward(x_nchw, params, sizes=(1, 2, 3, 6)):
    N, C, H, W = x_nchw.shape
    x = jnp.transpose(x_nchw, (0, 2, 3, 1)).astype(jnp.float32)
    priors = []
    for k, s in enumerate(sizes):
        Ph = _adaptive_pool_matrix(H, s)
        Pw = _adaptive_pool_matrix(W, s)
        pooled = jnp.einsum('qw,npwc->npqc', Pw, jnp.einsum('ph,nhwc->npwc', Ph, x))
        y = jnp.maximum(pooled @ params['stage_w'][k] + params['stage_b'][k], 0.0)
        Ah = _upsample_matrix(H, s)
        Aw = _upsample_matrix(W, s)
        up = jnp.einsum('wq,nhqc->nhwc', Aw, jnp.einsum('hp,npqc->nhqc', Ah, y))
        priors.append(up)
    priors.append(x)
    cat = jnp.concatenate(priors, axis=-1)
    xp = jnp.pad(cat, ((0, 0), (1, 1), (1, 1), (0, 0)))
    Cout = params['bottleneck_w'].shape[-1]
    acc = jnp.zeros((N, H, W, Cout), jnp.float32) + params['bottleneck_b']
    for dy in range(3):
        for dx in range(3):
            acc += jnp.einsum('nhwc,co->nhwo',
                              xp[:, dy:dy + H, dx:dx + W, :],
                              params['bottleneck_w'][dy, dx])
    return jnp.transpose(jnp.maximum(acc, 0.0), (0, 3, 1, 2))


if __name__ == "__main__":
    N, C, H, W = 2, 4, 16, 16          # small, forward-consistent shapes
    sizes = (1, 2, 3, 6)
    out_features = 32                  # scaled-down stand-in for 512

    key = jax.random.PRNGKey(0)
    k_x, k_sw, k_sb, k_bw, k_bb = jax.random.split(key, 5)
    x = jax.random.normal(k_x, (N, C, H, W), jnp.float32)

    sw_keys = jax.random.split(k_sw, len(sizes))
    sb_keys = jax.random.split(k_sb, len(sizes))
    params = {
        # 1x1 conv weights stored (Cin, Cout)  (PyTorch (Cout, Cin, 1, 1) transposed)
        'stage_w': [0.3 * jax.random.normal(sw_keys[i], (C, C), jnp.float32)
                    for i in range(len(sizes))],
        'stage_b': [0.1 * jax.random.normal(sb_keys[i], (C,), jnp.float32)
                    for i in range(len(sizes))],
        # 3x3 conv weight stored (kh, kw, Cin, Cout) (PyTorch (Cout, Cin, kh, kw) permuted)
        'bottleneck_w': 0.1 * jax.random.normal(
            k_bw, (3, 3, (len(sizes) + 1) * C, out_features), jnp.float32),
        'bottleneck_b': 0.1 * jax.random.normal(k_bb, (out_features,), jnp.float32),
    }

    out = psp_module_forward(x, params, sizes)
    out = jax.block_until_ready(out)

    assert out.shape == (N, out_features, H, W)
    ref = _ref_forward(x, params, sizes)
    # bf16 MXU operands (f32 accumulation) -> relaxed tolerance vs. the f32 reference
    np.testing.assert_allclose(np.asarray(out), np.asarray(ref),
                               rtol=3e-2, atol=3e-2)
    print("KERNEL_OK")
</pallas_src>

<mosaic_0001>
module attributes {stable_mosaic.version = 11 : i64} {
  func.func @_stage_conv1x1_kernel(%arg0: i32, %arg1: memref<1x72x4xbf16, #tpu.memory_space<vmem>>, %arg2: memref<1x4x4xbf16, #tpu.memory_space<vmem>>, %arg3: memref<1x1x4xf32, #tpu.memory_space<vmem>>, %arg4: memref<1x72x4xf32, #tpu.memory_space<vmem>>) attributes {dimension_semantics = [#tpu.dimension_semantics<parallel>], iteration_bounds = array<i64: 4>, scalar_prefetch = 0 : i64, scratch_operands = 0 : i64, tpu.core_type = #tpu.core_type<tc>, window_params = [{transform_indices = @transform_0, window_bounds = array<i64: 1, 72, 4>}, {transform_indices = @transform_1, window_bounds = array<i64: 1, 4, 4>}, {transform_indices = @transform_2, window_bounds = array<i64: 1, 1, 4>}, {transform_indices = @transform_3, window_bounds = array<i64: 1, 72, 4>}]} {
    %c0 = arith.constant 0 : index
    %c0_0 = arith.constant 0 : index
    %c0_1 = arith.constant 0 : index
    %0 = vector.load %arg1[%c0, %c0_0, %c0_1] : memref<1x72x4xbf16, #tpu.memory_space<vmem>>, vector<1x72x4xbf16>
    %1 = vector.shape_cast %0 : vector<1x72x4xbf16> to vector<72x4xbf16>
    %c0_2 = arith.constant 0 : index
    %c0_3 = arith.constant 0 : index
    %c0_4 = arith.constant 0 : index
    %2 = vector.load %arg2[%c0_2, %c0_3, %c0_4] : memref<1x4x4xbf16, #tpu.memory_space<vmem>>, vector<1x4x4xbf16>
    %3 = vector.shape_cast %2 : vector<1x4x4xbf16> to vector<4x4xbf16>
    %cst = arith.constant dense<0.000000e+00> : vector<72x4xf32>
    %4 = tpu.matmul %1, %3, %cst {dimension_numbers = #tpu.dot_dimension_numbers<[1], [0], [0], [1], [0, 0, 1, 1], [], []>} : vector<72x4xbf16>, vector<4x4xbf16>, vector<72x4xf32> -> vector<72x4xf32>
    %c0_5 = arith.constant 0 : index
    %c0_6 = arith.constant 0 : index
    %c0_7 = arith.constant 0 : index
    %5 = vector.load %arg3[%c0_5, %c0_6, %c0_7] : memref<1x1x4xf32, #tpu.memory_space<vmem>>, vector<1x1x4xf32>
    %6 = vector.shape_cast %5 : vector<1x1x4xf32> to vector<1x4xf32>
    %7 = vector.broadcast %6 : vector<1x4xf32> to vector<72x4xf32>
    %8 = arith.addf %4, %7 : vector<72x4xf32>
    %cst_8 = arith.constant 0.000000e+00 : f32
    %9 = vector.broadcast %cst_8 : f32 to vector<72x4xf32>
    %10 = arith.maximumf %8, %9 : vector<72x4xf32>
    %c0_9 = arith.constant 0 : index
    %c0_10 = arith.constant 0 : index
    %c0_11 = arith.constant 0 : index
    %11 = vector.load %arg4[%c0_9, %c0_10, %c0_11] : memref<1x72x4xf32, #tpu.memory_space<vmem>>, vector<1x72x4xf32>
    %12 = vector.shape_cast %11 : vector<1x72x4xf32> to vector<72x4xf32>
    %13 = vector.shape_cast %10 : vector<72x4xf32> to vector<1x72x4xf32>
    tpu.vector_store %arg4[%c0_9, %c0_10, %c0_11], %13 {strides = array<i32>} : memref<1x72x4xf32, #tpu.memory_space<vmem>>, vector<1x72x4xf32>,
    return
  }
  func.func @transform_0(%arg0: i32) -> (i32, i32, i32) {
    %c0_i32 = arith.constant 0 : i32
    %c0_i32_0 = arith.constant 0 : i32
    %c0_i32_1 = arith.constant 0 : i32
    return %arg0, %c0_i32, %c0_i32_0 : i32, i32, i32
  }
  func.func @transform_1(%arg0: i32) -> (i32, i32, i32) {
    %c0_i32 = arith.constant 0 : i32
    %c0_i32_0 = arith.constant 0 : i32
    %c0_i32_1 = arith.constant 0 : i32
    return %arg0, %c0_i32, %c0_i32_0 : i32, i32, i32
  }
  func.func @transform_2(%arg0: i32) -> (i32, i32, i32) {
    %c0_i32 = arith.constant 0 : i32
    %c0_i32_0 = arith.constant 0 : i32
    %c0_i32_1 = arith.constant 0 : i32
    return %arg0, %c0_i32, %c0_i32_0 : i32, i32, i32
  }
  func.func @transform_3(%arg0: i32) -> (i32, i32, i32) {
    %c0_i32 = arith.constant 0 : i32
    %c0_i32_0 = arith.constant 0 : i32
    %c0_i32_1 = arith.constant 0 : i32
    return %arg0, %c0_i32, %c0_i32_0 : i32, i32, i32
  }
}

</mosaic_0001>

<llo_original>
// kernel: tpu_custom_call.1
$region0: #{tpu_custom_call.1}
  #allocation0 [shape = 'u32[]', space=smem, size = 0x4, offset = 0x4, fixed_abs, tag = 'smem constant byte address 0x4 - core index']
  #allocation1 [shape = 'u32[144,128]{1,0:T(1,128)}', space=vmem, size = 0x12000, scoped, tag = 'internal scratch']
  %s0 = inlined_call_operand.vmem [shape: bf16[4,72,4], index: 0, kind: input, shape index: {}]
  %s1 = inlined_call_operand.vmem [shape: bf16[4,4,4], index: 1, kind: input, shape index: {}]
  %s2 = inlined_call_operand.vmem [shape: f32[4,1,4], index: 2, kind: input, shape index: {}]
  %s3 = inlined_call_operand.vmem [shape: f32[4,72,4], index: 3, kind: output, shape index: {}]
  %s4 = sld [smem:[#allocation0]]
  $region45: #{tpu_custom_call.1} parent=0
    _
  %s6 = ssub.s32 1, %s4
  %s7 = scalar_select 0, %s6, %s4
  loop: start=0, step=1, limit=6
  $region2: #{tpu_custom_call.1} parent=0 // loop_pre_header
    _
  $region3: #{tpu_custom_call.1} parent=0 // loop_header
    %s9 = sphi 0, %s13
    %p10 = scmp.ge.s32.totalorder %s9, 6
    %s19 = sphi 0, %s21
    %s22 = sphi 0, %s19
    %s23 = sphi 0, %s22
    %s39 = sphi 0, %s23
    %s45 = sphi 0, %s47
    %s48 = sphi 0, %s45
    %s49 = sphi 0, %s48
    %s65 = sphi 0, %s49
    %s71 = sphi 0, %s73
    %s74 = sphi 0, %s71
    %s75 = sphi 0, %s74
    %s91 = sphi 0, %s75
    %s97 = sphi 0, %s99
    %s100 = sphi 0, %s97
    %s101 = sphi 0, %s100
    %s117 = sphi 0, %s101
  $region4: #{tpu_custom_call.1} parent=0 // loop_header_branch
    %12 = sbr.rel (%p10) target = $region8
  $region5: #{tpu_custom_call.1} parent=0 // loop_body
    %s14 = ssub.s32 %s9, 1
    %s15 = ssub.s32 %s9, 2
    %s16 = sadd.s32 %s9, 1
    %s17 = ssub.s32 %s9, %s16
    %p18 = scmp.eq.s32.totalorder %s17, 0
    %s20 = sadd.s32 %s19, 1
    %s21 = scalar_select %p18, %s19, %s20
    %p24 = pneg %p18
    %p25 = scmp.eq.s32.totalorder %s9, 3
    %p26 = por %p24, %p25
    %p27 = scmp.ne.s32.totalorder %s19, %s22
    %p28 = scmp.eq.s32.totalorder %s9, 0
    %p29 = por %p27, %p28
    %p30 = scmp.ne.s32.totalorder %s19, %s22
    %p31 = scmp.eq.s32.totalorder %s14, 3
    %p32 = por %p30, %p31
    %p33 = scmp.ne.s32.totalorder %s22, %s23
    %p34 = scmp.eq.s32.totalorder %s14, 0
    %p35 = por %p33, %p34
    %p36 = scmp.ne.s32.totalorder %s22, %s23
    %p37 = scmp.eq.s32.totalorder %s15, 3
    %p38 = por %p36, %p37
    %p40 = scmp.ne.s32.totalorder %s23, %s39
    %p41 = scmp.eq.s32.totalorder %s15, 0
    %p42 = por %p40, %p41
    %s43 = ssub.s32 %s9, %s16
    %p44 = scmp.eq.s32.totalorder %s43, 0
    %s46 = sadd.s32 %s45, 1
    %s47 = scalar_select %p44, %s45, %s46
    %p50 = pneg %p44
    %p51 = scmp.eq.s32.totalorder %s9, 3
    %p52 = por %p50, %p51
    %p53 = scmp.ne.s32.totalorder %s45, %s48
    %p54 = scmp.eq.s32.totalorder %s9, 0
    %p55 = por %p53, %p54
    %p56 = scmp.ne.s32.totalorder %s45, %s48
    %p57 = scmp.eq.s32.totalorder %s14, 3
    %p58 = por %p56, %p57
    %p59 = scmp.ne.s32.totalorder %s48, %s49
    %p60 = scmp.eq.s32.totalorder %s14, 0
    %p61 = por %p59, %p60
    %p62 = scmp.ne.s32.totalorder %s48, %s49
    %p63 = scmp.eq.s32.totalorder %s15, 3
    %p64 = por %p62, %p63
    %p66 = scmp.ne.s32.totalorder %s49, %s65
    %p67 = scmp.eq.s32.totalorder %s15, 0
    %p68 = por %p66, %p67
    %s69 = ssub.s32 %s9, %s16
    %p70 = scmp.eq.s32.totalorder %s69, 0
    %s72 = sadd.s32 %s71, 1
    %s73 = scalar_select %p70, %s71, %s72
    %p76 = pneg %p70
    %p77 = scmp.eq.s32.totalorder %s9, 3
    %p78 = por %p76, %p77
    %p79 = scmp.ne.s32.totalorder %s71, %s74
    %p80 = scmp.eq.s32.totalorder %s9, 0
    %p81 = por %p79, %p80
    %p82 = scmp.ne.s32.totalorder %s71, %s74
    %p83 = scmp.eq.s32.totalorder %s14, 3
    %p84 = por %p82, %p83
    %p85 = scmp.ne.s32.totalorder %s74, %s75
    %p86 = scmp.eq.s32.totalorder %s14, 0
    %p87 = por %p85, %p86
    %p88 = scmp.ne.s32.totalorder %s74, %s75
    %p89 = scmp.eq.s32.totalorder %s15, 3
    %p90 = por %p88, %p89
    %p92 = scmp.ne.s32.totalorder %s75, %s91
    %p93 = scmp.eq.s32.totalorder %s15, 0
    %p94 = por %p92, %p93
    %s95 = ssub.s32 %s9, %s16
    %p96 = scmp.eq.s32.totalorder %s95, 0
    %s98 = sadd.s32 %s97, 1
    %s99 = scalar_select %p96, %s97, %s98
    %p102 = pneg %p96
    %p103 = scmp.eq.s32.totalorder %s9, 3
    %p104 = por %p102, %p103
    %p105 = scmp.ne.s32.totalorder %s97, %s100
    %p106 = scmp.eq.s32.totalorder %s9, 0
    %p107 = por %p105, %p106
    %p108 = scmp.ne.s32.totalorder %s97, %s100
    %p109 = scmp.eq.s32.totalorder %s14, 3
    %p110 = por %p108, %p109
    %p111 = scmp.ne.s32.totalorder %s100, %s101
    %p112 = scmp.eq.s32.totalorder %s14, 0
    %p113 = por %p111, %p112
    %p114 = scmp.ne.s32.totalorder %s100, %s101
    %p115 = scmp.eq.s32.totalorder %s15, 3
    %p116 = por %p114, %p115
    %p118 = scmp.ne.s32.totalorder %s101, %s117
    %p119 = scmp.eq.s32.totalorder %s15, 0
    %p120 = por %p118, %p119
    %p121 = scmp.le.s32.totalorder 1, %s9
    %p122 = scmp.lt.s32.totalorder %s9, 5
    %p123 = pnand %p121, %p122
    %p124 = pneg %p123
    // Predicated region
    $region9: #{tpu_custom_call.1} parent=5 // pred_check
      _
    $region10: #{tpu_custom_call.1} parent=5 // pred_check_branch
      %126 = sbr.rel (%p123) target = $region12
    $region11: #{tpu_custom_call.1} parent=5 // pred_region
      %s127 = ssub.s32 %s9, 1
    $region12: #{tpu_custom_call.1} parent=5 // pred_fallthru
      _
    %p128 = scmp.lt.s32.totalorder %s9, 4
    // Predicated region
    $region13: #{tpu_custom_call.1} parent=5 // pred_check
      %p129 = pneg %p128
    $region14: #{tpu_custom_call.1} parent=5 // pred_check_branch
      %131 = sbr.rel (%p129) target = $region16
    $region15: #{tpu_custom_call.1} parent=5 // pred_region
      // Predicated region
      $region17: #{tpu_custom_call.1} parent=15 // pred_check
        %p132 = pneg %p29
      $region18: #{tpu_custom_call.1} parent=15 // pred_check_branch
        %134 = sbr.rel (%p132) target = $region20
      $region19: #{tpu_custom_call.1} parent=15 // pred_region
        %p135 = scmp.lt.s32.totalorder %s9, 3
        %s136 = scalar_select %p135, %s9, 3
        %s137 = smul.addr %s136, 9
        %s138 = smul.addr %s137, 4
        %s139 = scalar_lea.vmem %s0, %s138
      $region20: #{tpu_custom_call.1} parent=15 // pred_fallthru
        _
      // Predicated region
      $region21: #{tpu_custom_call.1} parent=15 // pred_check
        %p140 = pneg %p55
      $region22: #{tpu_custom_call.1} parent=15 // pred_check_branch
        %142 = sbr.rel (%p140) target = $region24
      $region23: #{tpu_custom_call.1} parent=15 // pred_region
        %p143 = scmp.lt.s32.totalorder %s9, 3
        %s144 = scalar_select %p143, %s9, 3
        %s145 = smul.addr %s144, 2
        %s146 = scalar_lea.vmem %s1, %s145
      $region24: #{tpu_custom_call.1} parent=15 // pred_fallthru
        _
      // Predicated region
      $region25: #{tpu_custom_call.1} parent=15 // pred_check
        %p147 = pneg %p81
      $region26: #{tpu_custom_call.1} parent=15 // pred_check_branch
        %149 = sbr.rel (%p147) target = $region28
      $region27: #{tpu_custom_call.1} parent=15 // pred_region
        %p150 = scmp.lt.s32.totalorder %s9, 3
        %s151 = scalar_select %p150, %s9, 3
        %s152 = scalar_lea.vmem %s2, %s151
      $region28: #{tpu_custom_call.1} parent=15 // pred_fallthru
        _
    $region16: #{tpu_custom_call.1} parent=5 // pred_fallthru
      _
    %p153 = scmp.le.s32.totalorder 1, %s9
    %p154 = scmp.lt.s32.totalorder %s9, 5
    %p155 = pnand %p153, %p154
    %p156 = pneg %p155
    // Predicated region
    $region29: #{tpu_custom_call.1} parent=5 // pred_check
      _
    $region30: #{tpu_custom_call.1} parent=5 // pred_check_branch
      %158 = sbr.rel (%p155) target = $region32
    $region31: #{tpu_custom_call.1} parent=5 // pred_region
      %s159 = ssub.s32 %s9, 1
      %p160 = scmp.lt.s32.totalorder %s14, 3
      %s161 = scalar_select %p160, %s14, 3
      %s162 = smul.addr %s161, 9
      %s163 = smul.addr %s162, 4
      %s164 = scalar_lea.vmem %s0, %s163
      %p165 = pneg %p35
      %p166 = pneg %p32
      %p167 = scmp.lt.s32.totalorder %s14, 3
      %s168 = scalar_select %p167, %s14, 3
      %s169 = smul.addr %s168, 2
      %s170 = scalar_lea.vmem %s1, %s169
      %p171 = pneg %p61
      %p172 = pneg %p58
      %p173 = scmp.lt.s32.totalorder %s14, 3
      %s174 = scalar_select %p173, %s14, 3
      %s175 = scalar_lea.vmem %s2, %s174
      %p176 = pneg %p87
      %p177 = pneg %p84
      %p178 = pneg %p113
      %p179 = pneg %p110
      %p180 = scmp.lt.s32.totalorder %s14, 3
      %s181 = scalar_select %p180, %s14, 3
      %s182 = smul.addr %s181, 9
      %s183 = smul.addr %s182, 8
      %s184 = scalar_lea.vmem %s3, %s183
      %p185 = scmp.lt.s32.totalorder %s14, 3
      %s186 = scalar_select %p185, %s14, 3
      %s187 = smul.addr %s186, 9
      %s188 = smul.addr %s187, 4
      %s189 = scalar_lea.vmem %s0, %s188
      %p190 = scmp.lt.s32.totalorder %s14, 3
      %s191 = scalar_select %p190, %s14, 3
      %s192 = smul.addr %s191, 2
      %s193 = scalar_lea.vmem %s1, %s192
      %p194 = scmp.lt.s32.totalorder %s14, 3
      %s195 = scalar_select %p194, %s14, 3
      %s196 = scalar_lea.vmem %s2, %s195
      %p197 = scmp.lt.s32.totalorder %s14, 3
      %s198 = scalar_select %p197, %s14, 3
      %s199 = smul.addr %s198, 9
      %s200 = smul.addr %s199, 8
      %s201 = scalar_lea.vmem %s3, %s200
      %v203 = vld [vmem:[%s189] sm:$0xf]
      %v204 = vld [vmem:[%s189 + $0x4] sm:$0xf]
      %v205 = vld [vmem:[%s189 + $0x8] sm:$0xf]
      %v206 = vld [vmem:[%s189 + $0xc] sm:$0xf]
      %v207 = vld [vmem:[%s189 + $0x10] sm:$0xf]
      %v208 = vld [vmem:[%s189 + $0x14] sm:$0xf]
      %v209 = vld [vmem:[%s189 + $0x18] sm:$0xf]
      %v210 = vld [vmem:[%s189 + $0x1c] sm:$0xf]
      %v211 = vld [vmem:[%s189 + $0x20] sm:$0xf]
      %v212 = vld [vmem:[%s193] sm:$0x3]
      %v213 = vld [vmem:[%s196] sm:$0x1]
      %v215 = vlaneseq
      %v216 = vshrl.u32 %v215, 7
      %v217 = vsub.s32 0, %v216
      %v218 = vrot.slane %v213, %v217
      %v229 = vunpack.c.l.b16 %v203
      %v230 = vunpack.c.l.b16 %v204
      %v231 = vunpack.c.l.b16 %v205
      %v232 = vunpack.c.l.b16 %v206
      %v233 = vunpack.c.l.b16 %v207
      %v234 = vunpack.c.l.b16 %v208
      %v235 = vunpack.c.l.b16 %v209
      %v236 = vunpack.c.l.b16 %v210
      %v237 = vunpack.c.l.b16 %v211
      %v238 = vpack.c.b16 %v230, %v229
      %v239 = vpack.c.b16 %v232, %v231
      %v240 = vpack.c.b16 %v234, %v233
      %v241 = vpack.c.b16 %v236, %v235
      %v242 = vpack.c.b16 %v237, %v237
      %vm243 = vcmask 31744
      %v245 = vsel %vm243, %v238, 0
      %v248 = vsel %vm243, %v239, 0
      %v251 = vsel %vm243, %v240, 0
      %v254 = vsel %vm243, %v241, 0
      %v257 = vsel %vm243, %v242, 0
      %vm259 = vcmask 1041408
      %v261 = vsel %vm259, %v212, 0
      %263 = vmatprep.subr.bf16.mxu0 0
      %264 = vmatpush1.bf16.msra.mxu0 %v261
      %265 = vmatprep.subr.bf16.mxu0 0
      %266 = vmatpush1.bf16.msra.mxu0 0
      %267 = vmatprep.subr.bf16.mxu0 0
      %268 = vmatpush1.bf16.msra.mxu0 0
      %269 = vmatprep.subr.bf16.mxu0 0
      %270 = vmatpush1.bf16.msra.mxu0 0
      %271 = vmatprep.subr.bf16.mxu0 0
      %272 = vmatpush1.bf16.msra.mxu0 0
      %273 = vmatprep.subr.bf16.mxu0 0
      %274 = vmatpush1.bf16.msra.mxu0 0
      %275 = vmatprep.subr.bf16.mxu0 0
      %276 = vmatpush1.bf16.msra.mxu0 0
      %277 = vmatprep.subr.bf16.mxu0 0
      %278 = vmatpush1.bf16.msra.mxu0 0
      %279 = vmatprep.subr.bf16.mxu0 0
      %280 = vmatpush1.bf16.msra.mxu0 0
      %281 = vmatprep.subr.bf16.mxu0 0
      %282 = vmatpush1.bf16.msra.mxu0 0
      %283 = vmatprep.subr.bf16.mxu0 0
      %284 = vmatpush1.bf16.msra.mxu0 0
      %285 = vmatprep.subr.bf16.mxu0 0
      %286 = vmatpush1.bf16.msra.mxu0 0
      %287 = vmatprep.subr.bf16.mxu0 0
      %288 = vmatpush1.bf16.msra.mxu0 0
      %289 = vmatprep.subr.bf16.mxu0 0
      %290 = vmatpush1.bf16.msra.mxu0 0
      %291 = vmatprep.subr.bf16.mxu0 0
      %292 = vmatpush1.bf16.msra.mxu0 0
      %293 = vmatprep.subr.bf16.mxu0 0
      %294 = vmatpush1.bf16.msra.mxu0 0
      %295 = vmatprep.mubr.bf16.mxu0 0
      %296 = vmatmul.mubr.bf16.gmra.mrb[0].mxu0 %v245
      %v297 = vpop.f32.mrb[0].mxu0
      %v298 = vadd.f32 %v218, %v297
      %v299 = vpop.f32.mrb[0].mxu0
      %v300 = vpop.f32.mrb[0].mxu0
      %v301 = vadd.f32 %v218, %v300
      %v302 = vpop.f32.mrb[0].mxu0
      %303 = vmatprep.mubr.bf16.mxu0 0
      %304 = vmatmul.mubr.bf16.gmra.mrb[0].mxu0 %v248
      %v305 = vpop.f32.mrb[0].mxu0
      %v306 = vadd.f32 %v218, %v305
      %v307 = vpop.f32.mrb[0].mxu0
      %v308 = vpop.f32.mrb[0].mxu0
      %v309 = vadd.f32 %v218, %v308
      %v310 = vpop.f32.mrb[0].mxu0
      %311 = vmatprep.mubr.bf16.mxu0 0
      %312 = vmatmul.mubr.bf16.gmra.mrb[0].mxu0 %v251
      %v313 = vpop.f32.mrb[0].mxu0
      %v314 = vadd.f32 %v218, %v313
      %v315 = vpop.f32.mrb[0].mxu0
      %v316 = vpop.f32.mrb[0].mxu0
      %v317 = vadd.f32 %v218, %v316
      %v318 = vpop.f32.mrb[0].mxu0
      %319 = vmatprep.mubr.bf16.mxu0 0
      %320 = vmatmul.mubr.bf16.gmra.mrb[0].mxu0 %v254
      %v321 = vpop.f32.mrb[0].mxu0
      %v322 = vadd.f32 %v218, %v321
      %v323 = vpop.f32.mrb[0].mxu0
      %v324 = vpop.f32.mrb[0].mxu0
      %v325 = vadd.f32 %v218, %v324
      %v326 = vpop.f32.mrb[0].mxu0
      %327 = vmatprep.mubr.bf16.mxu0 0
      %328 = vmatmul.mubr.bf16.gmra.mrb[0].mxu0 %v257
      %v329 = vpop.f32.mrb[0].mxu0
      %v330 = vadd.f32 %v218, %v329
      %v331 = vpop.f32.mrb[0].mxu0
      %v332 = vpop.f32.mrb[0].mxu0
      %v333 = vpop.f32.mrb[0].mxu0
      %334 = vdwg.mxu0
      %v335 = vmax.f32 %v298, 0.0
      %v336 = vmax.f32 %v301, 0.0
      %v337 = vmax.f32 %v306, 0.0
      %v338 = vmax.f32 %v309, 0.0
      %v339 = vmax.f32 %v314, 0.0
      %v340 = vmax.f32 %v317, 0.0
      %v341 = vmax.f32 %v322, 0.0
      %v342 = vmax.f32 %v325, 0.0
      %v343 = vmax.f32 %v330, 0.0
      %344 = vst.msk [vmem:[%s201] sm:$0xff] %vm243, %v335
      %345 = vst.msk [vmem:[%s201 + $0x8] sm:$0xff] %vm243, %v336
      %346 = vst.msk [vmem:[%s201 + $0x10] sm:$0xff] %vm243, %v337
      %347 = vst.msk [vmem:[%s201 + $0x18] sm:$0xff] %vm243, %v338
      %348 = vst.msk [vmem:[%s201 + $0x20] sm:$0xff] %vm243, %v339
      %349 = vst.msk [vmem:[%s201 + $0x28] sm:$0xff] %vm243, %v340
      %350 = vst.msk [vmem:[%s201 + $0x30] sm:$0xff] %vm243, %v341
      %351 = vst.msk [vmem:[%s201 + $0x38] sm:$0xff] %vm243, %v342
      %352 = vst.msk [vmem:[%s201 + $0x40] sm:$0xff] %vm243, %v343
      %p353 = scmp.lt.s32.totalorder %s14, 3
      %s354 = scalar_select %p353, %s14, 3
      %s355 = smul.addr %s354, 9
      %s356 = smul.addr %s355, 8
      %s357 = scalar_lea.vmem %s3, %s356
      // Predicated region
      $region33: #{tpu_custom_call.1} parent=31 // pred_check
        %p358 = pneg %p110
      $region34: #{tpu_custom_call.1} parent=31 // pred_check_branch
        %360 = sbr.rel (%p358) target = $region36
      $region35: #{tpu_custom_call.1} parent=31 // pred_region
        _
      $region36: #{tpu_custom_call.1} parent=31 // pred_fallthru
        _
    $region32: #{tpu_custom_call.1} parent=5 // pred_fallthru
      _
    %p361 = scmp.le.s32.totalorder 2, %s9
    // Predicated region
    $region37: #{tpu_custom_call.1} parent=5 // pred_check
      %p362 = pneg %p361
    $region38: #{tpu_custom_call.1} parent=5 // pred_check_branch
      %364 = sbr.rel (%p362) target = $region40
    $region39: #{tpu_custom_call.1} parent=5 // pred_region
      %s365 = ssub.s32 %s9, 2
      // Predicated region
      $region41: #{tpu_custom_call.1} parent=39 // pred_check
        %p366 = pneg %p116
      $region42: #{tpu_custom_call.1} parent=39 // pred_check_branch
        %368 = sbr.rel (%p366) target = $region44
      $region43: #{tpu_custom_call.1} parent=39 // pred_region
        %p369 = scmp.lt.s32.totalorder %s15, 3
        %s370 = scalar_select %p369, %s15, 3
        %s371 = smul.addr %s370, 9
        %s372 = smul.addr %s371, 8
        %s373 = scalar_lea.vmem %s3, %s372
      $region44: #{tpu_custom_call.1} parent=39 // pred_fallthru
        _
    $region40: #{tpu_custom_call.1} parent=5 // pred_fallthru
      _
  $region6: #{tpu_custom_call.1} parent=0 // loop_footer
    %s13 = sadd.s32 1, %s9
  $region7: #{tpu_custom_call.1} parent=0 // loop_footer_branch
    %8 = sbr.rel target = $region3
  $region8: #{tpu_custom_call.1} parent=0 // loop_exit
    _

</llo_original>
